<compile_context>
chip_gen: v6e
topology: v6e:2x2x1
jax: 0.10.0
libtpu: 0.0.40
codegen_flags: <defaults>
</compile_context>

<pallas_src>
import jax
import jax.numpy as jnp
from jax.experimental import pallas as pl
from jax.experimental.pallas import tpu as pltpu

_LANE = 128        # lane width: lane dims must be padded to a multiple of this
_PAD_UNIT = 1024   # large user/item axes padded to a multiple of this so tk can reach 1024


def _round_up(x: int, m: int) -> int:
    return ((x + m - 1) // m) * m


def _pad_dim(n: int, unit: int = _PAD_UNIT) -> int:
    """Padded size for the user/item axes (used both as row dims and as K dims)."""
    p = _round_up(n, _LANE)
    return p if p <= unit else _round_up(n, unit)


def _pick_tile(dim: int, cap: int, base: int) -> int:
    """Largest tile <= cap that divides `dim` (dim is pre-padded to a multiple of base)."""
    if dim <= cap:
        return dim
    t = cap
    while t > base:
        if dim % t == 0:
            return t
        t //= 2
    return base


def _pad2(x, rows: int, cols: int):
    r, c = x.shape
    if (r, c) == (rows, cols):
        return x
    return jnp.pad(x, ((0, rows - r), (0, cols - c)))


def _make_matmul_kernel(*, tk: int, apply_relu: bool, use_acc_scratch: bool):
    """C[i] = sum_k A[i, k] @ B[k]  with B fully resident in VMEM.

    k is the inner (reduction) grid axis. The f32 accumulator is either the
    output block itself (f32 outputs) or a VMEM scratch (narrow outputs), and
    ReLU is fused into the last-k epilogue.
    """

    def _body(a_ref, b_ref, o_ref, acc_ref):
        k = pl.program_id(1)
        tgt = acc_ref if use_acc_scratch else o_ref

        @pl.when(k == 0)
        def _init():
            tgt[...] = jnp.zeros_like(tgt)

        koff = pl.multiple_of(k * tk, tk)
        tgt[...] += jnp.dot(a_ref[...], b_ref[pl.ds(koff, tk), :],
                            preferred_element_type=jnp.float32)

        if use_acc_scratch or apply_relu:
            @pl.when(k == pl.num_programs(1) - 1)
            def _finalize():
                y = tgt[...]
                if apply_relu:
                    y = jnp.maximum(y, 0.0)
                o_ref[...] = y.astype(o_ref.dtype)

    if use_acc_scratch:
        def kernel(a_ref, b_ref, o_ref, acc_ref):
            _body(a_ref, b_ref, o_ref, acc_ref)
    else:
        def kernel(a_ref, b_ref, o_ref):
            _body(a_ref, b_ref, o_ref, None)
    return kernel


def matmul_resident_b(a, b, *, apply_relu=False, out_dtype=None,
                      tm_max=512, tk_max=1024):
    """C = A @ B (optional fused ReLU) for pre-padded operands with a small N.

    A: [M, K] (M % 8 == 0, K % 128 == 0), B: [K, N] (N % 128 == 0, N small
    enough that a full [K, N] slab + one A row tile fits VMEM). B uses a
    constant index_map so it is DMA'd into VMEM once for the whole kernel
    instead of once per row tile; the kernel slices the k-chunk with pl.ds.
    """
    M, K = a.shape
    K2, N = b.shape
    if K != K2:
        raise ValueError(f"inner dims mismatch: {a.shape} @ {b.shape}")
    if M % 8 or K % _LANE or N % _LANE:
        raise ValueError("operands must be pre-padded (M%8==0, K%128==0, N%128==0)")
    out_dtype = jnp.dtype(out_dtype if out_dtype is not None else a.dtype)

    # Row tiles stay <= 512 so Mp/tm keeps several independent "parallel" row
    # tiles for megacore sharding on v7x; tk up to 1024 on the long K axis.
    tm = _pick_tile(M, tm_max, 8)
    tk = _pick_tile(K, tk_max, _LANE)
    grid = (M // tm, K // tk)

    use_acc_scratch = out_dtype != jnp.dtype(jnp.float32)
    scratch_shapes = [pltpu.VMEM((tm, N), jnp.float32)] if use_acc_scratch else []

    # Raise the scoped-VMEM budget for the resident B slab (double-buffered by
    # the default pipeline; pl.Buffered(1) on the B spec could halve this).
    vmem_bytes = (2 * K * N * b.dtype.itemsize          # resident B
                  + 2 * tm * tk * a.dtype.itemsize      # double-buffered A tile
                  + 2 * tm * N * out_dtype.itemsize     # double-buffered out tile
                  + (tm * N * 4 if use_acc_scratch else 0)
                  + (2 << 20))                          # headroom
    vmem_limit = int(max(vmem_bytes, 32 * 1024 * 1024))

    return pl.pallas_call(
        _make_matmul_kernel(tk=tk, apply_relu=apply_relu,
                            use_acc_scratch=use_acc_scratch),
        out_shape=jax.ShapeDtypeStruct((M, N), out_dtype),
        grid_spec=pltpu.PrefetchScalarGridSpec(
            num_scalar_prefetch=0,
            grid=grid,
            in_specs=[
                pl.BlockSpec((tm, tk), lambda i, k: (i, k)),   # A row/k tile
                pl.BlockSpec((K, N), lambda i, k: (0, 0)),     # B: full-K resident
            ],
            out_specs=pl.BlockSpec((tm, N), lambda i, k: (i, 0)),
            scratch_shapes=scratch_shapes,
        ),
        compiler_params=pltpu.CompilerParams(
            # Row tiles are independent (megacore-shardable); K is the
            # reduction axis and stays last / "arbitrary".
            dimension_semantics=("parallel", "arbitrary"),
            vmem_limit_bytes=vmem_limit,
        ),
    )(a, b)


def prepare_graph_conv_inputs(user_x, item_x, ui_graph, iu_graph, params,
                              *, graph_dtype=jnp.bfloat16):
    """One-time padding + casting of all (static) operands.

    Graphs / features / weights are padded to tile-friendly shapes and cast to
    `graph_dtype` exactly once, outside the per-step forward, so the forward
    itself issues no pad / astype HBM passes (zero padding is exact for a
    matmul chain). Call this once and reuse the result every step.
    """
    U, D = user_x.shape
    I, D2 = item_x.shape
    assert D == D2
    O = params["user_weight"].shape[1]
    assert params["user_weight"].shape == (D, O)
    assert params["item_weight"].shape == (D, O)
    assert ui_graph.shape == (U, I) and iu_graph.shape == (I, U)

    Up, Ip = _pad_dim(U), _pad_dim(I)
    Dp, Op = _round_up(D, _LANE), _round_up(O, _LANE)
    gd = jnp.dtype(graph_dtype)

    return dict(
        n_users=U, n_items=I, output_dim=O, graph_dtype=gd,
        user_x=_pad2(user_x.astype(gd), Up, Dp),
        item_x=_pad2(item_x.astype(gd), Ip, Dp),
        user_weight=_pad2(params["user_weight"].astype(gd), Dp, Op),
        item_weight=_pad2(params["item_weight"].astype(gd), Dp, Op),
        ui_graph=_pad2(ui_graph.astype(gd), Up, Ip),
        iu_graph=_pad2(iu_graph.astype(gd), Ip, Up),
    )


def graph_convolution_forward(prep, *, dropout=0.0, tm_max=512, tk_max=1024):
    """GraphConvolution.forward with the module's default flags
    (dropout=0.0, bias=False, activation=relu, dense features/graphs)."""
    # TODO(synk): dropout > 0 (train-time F.dropout) would need pltpu PRNG;
    # the module default 0.0 is an exact no-op.
    assert dropout == 0.0, "only the module's default dropout=0.0 is implemented"
    gd = prep["graph_dtype"]

    # Stage 1: feature transform, emitted directly in graph_dtype (f32 MXU
    # accumulation) and kept in padded form for stage 2 -- no slice / re-pad.
    xw_user = matmul_resident_b(prep["user_x"], prep["user_weight"],
                                out_dtype=gd, tm_max=tm_max, tk_max=tk_max)
    xw_item = matmul_resident_b(prep["item_x"], prep["item_weight"],
                                out_dtype=gd, tm_max=tm_max, tk_max=tk_max)

    # Stage 2: graph aggregation with fused ReLU; xw_* stays VMEM-resident
    # across all row tiles; f32 output accumulated in place.
    # TODO(synk): ui_graph/iu_graph are torch.sparse in the original; a
    # block-sparse PrefetchScalarGridSpec kernel (skip empty K blocks) would
    # dominate all dense tuning at real adjacency densities.
    out_user = matmul_resident_b(prep["ui_graph"], xw_item, apply_relu=True,
                                 out_dtype=jnp.float32,
                                 tm_max=tm_max, tk_max=tk_max)
    out_item = matmul_resident_b(prep["iu_graph"], xw_user, apply_relu=True,
                                 out_dtype=jnp.float32,
                                 tm_max=tm_max, tk_max=tk_max)

    # Slice padded outputs back to logical shapes (the only wrapper-side copy).
    U, I, O = prep["n_users"], prep["n_items"], prep["output_dim"]
    return out_user[:U, :O], out_item[:I, :O]


if __name__ == "__main__":
    key = jax.random.PRNGKey(0)
    input_dim, output_dim = 64, 32
    n_users, n_items = 300, 520   # small, but exercises multi-tile grids after padding

    k1, k2, k3, k4, k5, k6 = jax.random.split(key, 6)
    limit = (6.0 / (input_dim + output_dim)) ** 0.5   # xavier_uniform_
    params = {
        "user_weight": jax.random.uniform(k1, (input_dim, output_dim),
                                          jnp.float32, -limit, limit),
        "item_weight": jax.random.uniform(k2, (input_dim, output_dim),
                                          jnp.float32, -limit, limit),
    }
    user_x = jax.random.normal(k3, (n_users, input_dim), jnp.float32)
    item_x = jax.random.normal(k4, (n_items, input_dim), jnp.float32)
    # Dense stand-ins for the (sparse) normalized adjacency matrices.
    ui_graph = jax.random.uniform(k5, (n_users, n_items), jnp.float32)
    iu_graph = jax.random.uniform(k6, (n_items, n_users), jnp.float32)

    # Plain-JAX f32 reference of the PyTorch forward (default flags).
    xw_user_ref = user_x @ params["user_weight"]
    xw_item_ref = item_x @ params["item_weight"]
    ref_user = jnp.maximum(ui_graph @ xw_item_ref, 0.0)
    ref_item = jnp.maximum(iu_graph @ xw_user_ref, 0.0)

    # 1) f32 path, default tiles (resident B, single k block).
    prep_f32 = prepare_graph_conv_inputs(user_x, item_x, ui_graph, iu_graph,
                                         params, graph_dtype=jnp.float32)
    ou, oi = graph_convolution_forward(prep_f32)
    jax.block_until_ready((ou, oi))
    assert ou.shape == (n_users, output_dim) and oi.shape == (n_items, output_dim)
    assert jnp.allclose(ou, ref_user, atol=1e-2, rtol=5e-3)
    assert jnp.allclose(oi, ref_item, atol=1e-2, rtol=5e-3)

    # 2) f32 path, small tile caps -> multi-tile grid: k-accumulation into the
    #    output block, pl.ds slicing of the resident B, ReLU at the last k.
    ou2, oi2 = graph_convolution_forward(prep_f32, tm_max=128, tk_max=128)
    jax.block_until_ready((ou2, oi2))
    assert jnp.allclose(ou2, ref_user, atol=1e-2, rtol=5e-3)
    assert jnp.allclose(oi2, ref_item, atol=1e-2, rtol=5e-3)

    # 3) Default bf16 graph operands (f32 accumulation). Compare against a
    #    plain-JAX reference with the same bf16 quantization.
    prep_bf16 = prepare_graph_conv_inputs(user_x, item_x, ui_graph, iu_graph, params)
    ou3, oi3 = graph_convolution_forward(prep_bf16)
    jax.block_until_ready((ou3, oi3))
    bf = jnp.bfloat16
    xw_user_b = jnp.dot(user_x.astype(bf), params["user_weight"].astype(bf),
                        preferred_element_type=jnp.float32).astype(bf)
    xw_item_b = jnp.dot(item_x.astype(bf), params["item_weight"].astype(bf),
                        preferred_element_type=jnp.float32).astype(bf)
    ref_user_b = jnp.maximum(jnp.dot(ui_graph.astype(bf), xw_item_b,
                                     preferred_element_type=jnp.float32), 0.0)
    ref_item_b = jnp.maximum(jnp.dot(iu_graph.astype(bf), xw_user_b,
                                     preferred_element_type=jnp.float32), 0.0)
    assert jnp.allclose(ou3, ref_user_b, atol=0.15, rtol=2e-2)
    assert jnp.allclose(oi3, ref_item_b, atol=0.15, rtol=2e-2)

    print("KERNEL_OK")
</pallas_src>

<mosaic_0001>
module attributes {stable_mosaic.version = 11 : i64} {
  func.func @kernel(%arg0: i32, %arg1: i32, %arg2: memref<384x128xf32, #tpu.memory_space<vmem>>, %arg3: memref<128x128xf32, #tpu.memory_space<vmem>>, %arg4: memref<384x128xf32, #tpu.memory_space<vmem>>) attributes {dimension_semantics = [#tpu.dimension_semantics<parallel>, #tpu.dimension_semantics<arbitrary>], iteration_bounds = array<i64: 1, 1>, scalar_prefetch = 0 : i64, scratch_operands = 0 : i64, tpu.core_type = #tpu.core_type<tc>, window_params = [{transform_indices = @transform_0, window_bounds = array<i64: 384, 128>}, {pipeline_mode = #tpu.pipeline_mode<synchronous>, transform_indices = @transform_1, window_bounds = array<i64: 128, 128>}, {transform_indices = @transform_2, window_bounds = array<i64: 384, 128>}]} {
    %c0_i32 = arith.constant 0 : i32
    %0 = arith.cmpi eq, %arg1, %c0_i32 : i32
    %1 = arith.extui %0 : i1 to i32
    %c0_i32_0 = arith.constant 0 : i32
    %2 = arith.cmpi ne, %1, %c0_i32_0 : i32
    scf.if %2 {
      %cst_7 = arith.constant 0.000000e+00 : f32
      %12 = vector.broadcast %cst_7 : f32 to vector<384x128xf32>
      %c0_8 = arith.constant 0 : index
      %c0_9 = arith.constant 0 : index
      %13 = vector.load %arg4[%c0_8, %c0_9] : memref<384x128xf32, #tpu.memory_space<vmem>>, vector<384x128xf32>
      tpu.vector_store %arg4[%c0_8, %c0_9], %12 {strides = array<i32>} : memref<384x128xf32, #tpu.memory_space<vmem>>, vector<384x128xf32>,
    } else {
    }
    %c128_i32 = arith.constant 128 : i32
    %3 = arith.muli %arg1, %c128_i32 : i32
    %4 = tpu.assume_multiple %3, 128 : i32
    %c0 = arith.constant 0 : index
    %c0_1 = arith.constant 0 : index
    %5 = vector.load %arg4[%c0, %c0_1] : memref<384x128xf32, #tpu.memory_space<vmem>>, vector<384x128xf32>
    %c0_2 = arith.constant 0 : index
    %c0_3 = arith.constant 0 : index
    %6 = vector.load %arg2[%c0_2, %c0_3] : memref<384x128xf32, #tpu.memory_space<vmem>>, vector<384x128xf32>
    %7 = arith.index_cast %4 : i32 to index
    %c0_4 = arith.constant 0 : index
    %8 = vector.load %arg3[%7, %c0_4] : memref<128x128xf32, #tpu.memory_space<vmem>>, vector<128x128xf32>
    %cst = arith.constant dense<0.000000e+00> : vector<384x128xf32>
    %9 = tpu.matmul %6, %8, %cst {dimension_numbers = #tpu.dot_dimension_numbers<[1], [0], [0], [1], [0, 0, 1, 1], [], []>} : vector<384x128xf32>, vector<128x128xf32>, vector<384x128xf32> -> vector<384x128xf32>
    %10 = arith.addf %5, %9 : vector<384x128xf32>
    %c0_5 = arith.constant 0 : index
    %c0_6 = arith.constant 0 : index
    %11 = vector.load %arg4[%c0_5, %c0_6] : memref<384x128xf32, #tpu.memory_space<vmem>>, vector<384x128xf32>
    tpu.vector_store %arg4[%c0_5, %c0_6], %10 {strides = array<i32>} : memref<384x128xf32, #tpu.memory_space<vmem>>, vector<384x128xf32>,
    return
  }
  func.func @transform_0(%arg0: i32, %arg1: i32) -> (i32, i32) {
    %c0_i32 = arith.constant 0 : i32
    return %arg0, %arg1 : i32, i32
  }
  func.func @transform_1(%arg0: i32, %arg1: i32) -> (i32, i32) {
    %c0_i32 = arith.constant 0 : i32
    %c0_i32_0 = arith.constant 0 : i32
    %c0_i32_1 = arith.constant 0 : i32
    return %c0_i32, %c0_i32_0 : i32, i32
  }
  func.func @transform_2(%arg0: i32, %arg1: i32) -> (i32, i32) {
    %c0_i32 = arith.constant 0 : i32
    %c0_i32_0 = arith.constant 0 : i32
    return %arg0, %c0_i32 : i32, i32
  }
}

</mosaic_0001>

<llo_original>
// kernel: tpu_custom_call.1
$region0: #{tpu_custom_call.1}
  #allocation0 [shape = 'u32[]', space=smem, size = 0x4, offset = 0x4, fixed_abs, tag = 'smem constant byte address 0x4 - core index']
  #allocation1 [shape = 'u32[144,128]{1,0:T(1,128)}', space=vmem, size = 0x12000, scoped, tag = 'internal scratch']
  %s0 = inlined_call_operand.hbm [shape: f32[384,128], index: 0, kind: input, shape index: {}]
  %s1 = inlined_call_operand.hbm [shape: f32[128,128], index: 1, kind: input, shape index: {}]
  %s2 = inlined_call_operand.hbm [shape: f32[384,128], index: 2, kind: output, shape index: {}]
  %s3 = sld [smem:[#allocation0]]
  $region30: #{tpu_custom_call.1} parent=0
    _
  %s5 = ssub.s32 1, %s3
  %s6 = scalar_select 0, %s5, %s3
  $region1: #{tpu_custom_call.1} parent=0
    #allocation2 [shape = 'u8[196608]{0}', space=vmem, size = 0x30000, scoped, tag = 'input window, operand 0, single buffered']
    #allocation3 [shape = 's32[1]{0}', space=sflag, size = 0x4, scoped, tag = 'scoped memory for tpu_custom_call.1']
    #allocation4 [shape = 's32[1]{0}', space=sflag, size = 0x4, scoped, tag = 'scoped memory for tpu_custom_call.1']
    #allocation5 [shape = 'u8[65536]{0}', space=vmem, size = 0x10000, scoped, tag = 'input window, operand 1, single buffered']
    #allocation6 [shape = 's32[1]{0}', space=sflag, size = 0x4, scoped, tag = 'scoped memory for tpu_custom_call.1']
    #allocation7 [shape = 'u8[196608]{0}', space=vmem, size = 0x30000, scoped, tag = 'output window, operand 0, single buffered']
    %7 = vsyncpa [#allocation3], 0
    %8 = vsyncpa [#allocation6], 0
    %9 = vsyncpa [#allocation4], 0
    // Predicated region
    $region2: #{tpu_custom_call.1} parent=1 // pred_check
      _
    $region3: #{tpu_custom_call.1} parent=1 // pred_check_branch
      %11 = sbr.rel (0) target = $region5
    $region4: #{tpu_custom_call.1} parent=1 // pred_region
      %s13 = ssub.s32 6144, 6144
      %14 = vsyncadd [#allocation3], %s13
      %s15 = sshll.u32 [#allocation2], 4
      %s16 = int_to_ptr.vmem [resolvable:$true] %s15
      %21 = dma.hbm_to_vmem [thread:$0]  %s0, 6144, %s16, [#allocation3], 128, 128, 8
    $region5: #{tpu_custom_call.1} parent=1 // pred_fallthru
      _
    // Predicated region
    $region6: #{tpu_custom_call.1} parent=1 // pred_check
      _
    $region7: #{tpu_custom_call.1} parent=1 // pred_check_branch
      %23 = sbr.rel (0) target = $region9
    $region8: #{tpu_custom_call.1} parent=1 // pred_region
      %s25 = ssub.s32 2048, 2048
      %26 = vsyncadd [#allocation6], %s25
      %s27 = sshll.u32 [#allocation5], 4
      %s28 = int_to_ptr.vmem [resolvable:$true] %s27
      %33 = dma.hbm_to_vmem [thread:$0]  %s1, 2048, %s28, [#allocation6], 128, 128, 8
    $region9: #{tpu_custom_call.1} parent=1 // pred_fallthru
      _
    // Predicated region
    $region10: #{tpu_custom_call.1} parent=1 // pred_check
      _
    $region11: #{tpu_custom_call.1} parent=1 // pred_check_branch
      %35 = sbr.rel (0) target = $region13
    $region12: #{tpu_custom_call.1} parent=1 // pred_region
      %36 = dma.done [#allocation3], 6144
    $region13: #{tpu_custom_call.1} parent=1 // pred_fallthru
      _
    // Predicated region
    $region14: #{tpu_custom_call.1} parent=1 // pred_check
      _
    $region15: #{tpu_custom_call.1} parent=1 // pred_check_branch
      %38 = sbr.rel (0) target = $region17
    $region16: #{tpu_custom_call.1} parent=1 // pred_region
      %39 = dma.done [#allocation6], 2048
    $region17: #{tpu_custom_call.1} parent=1 // pred_fallthru
      _
    %p40 = scmp.eq.s32.totalorder 0, 0
    // Predicated region
    $region18: #{tpu_custom_call.1} parent=1 // pred_check
      %p41 = pneg %p40
    $region19: #{tpu_custom_call.1} parent=1 // pred_check_branch
      %43 = sbr.rel (%p41) target = $region21
    $region20: #{tpu_custom_call.1} parent=1 // pred_region
      %44 = vst [vmem:[#allocation7] sm:$0xff] 0.0
      %45 = vst [vmem:[#allocation7 + $0x8] sm:$0xff] 0.0
      %46 = vst [vmem:[#allocation7 + $0x10] sm:$0xff] 0.0
      %47 = vst [vmem:[#allocation7 + $0x18] sm:$0xff] 0.0
      %48 = vst [vmem:[#allocation7 + $0x20] sm:$0xff] 0.0
      %49 = vst [vmem:[#allocation7 + $0x28] sm:$0xff] 0.0
      %50 = vst [vmem:[#allocation7 + $0x30] sm:$0xff] 0.0
      %51 = vst [vmem:[#allocation7 + $0x38] sm:$0xff] 0.0
      %52 = vst [vmem:[#allocation7 + $0x40] sm:$0xff] 0.0
      %53 = vst [vmem:[#allocation7 + $0x48] sm:$0xff] 0.0
      %54 = vst [vmem:[#allocation7 + $0x50] sm:$0xff] 0.0
      %55 = vst [vmem:[#allocation7 + $0x58] sm:$0xff] 0.0
      %56 = vst [vmem:[#allocation7 + $0x60] sm:$0xff] 0.0
      %57 = vst [vmem:[#allocation7 + $0x68] sm:$0xff] 0.0
      %58 = vst [vmem:[#allocation7 + $0x70] sm:$0xff] 0.0
      %59 = vst [vmem:[#allocation7 + $0x78] sm:$0xff] 0.0
      %60 = vst [vmem:[#allocation7 + $0x80] sm:$0xff] 0.0
      %61 = vst [vmem:[#allocation7 + $0x88] sm:$0xff] 0.0
      %62 = vst [vmem:[#allocation7 + $0x90] sm:$0xff] 0.0
      %63 = vst [vmem:[#allocation7 + $0x98] sm:$0xff] 0.0
      %64 = vst [vmem:[#allocation7 + $0xa0] sm:$0xff] 0.0
      %65 = vst [vmem:[#allocation7 + $0xa8] sm:$0xff] 0.0
      %66 = vst [vmem:[#allocation7 + $0xb0] sm:$0xff] 0.0
      %67 = vst [vmem:[#allocation7 + $0xb8] sm:$0xff] 0.0
      %68 = vst [vmem:[#allocation7 + $0xc0] sm:$0xff] 0.0
      %69 = vst [vmem:[#allocation7 + $0xc8] sm:$0xff] 0.0
      %70 = vst [vmem:[#allocation7 + $0xd0] sm:$0xff] 0.0
      %71 = vst [vmem:[#allocation7 + $0xd8] sm:$0xff] 0.0
      %72 = vst [vmem:[#allocation7 + $0xe0] sm:$0xff] 0.0
      %73 = vst [vmem:[#allocation7 + $0xe8] sm:$0xff] 0.0
      %74 = vst [vmem:[#allocation7 + $0xf0] sm:$0xff] 0.0
      %75 = vst [vmem:[#allocation7 + $0xf8] sm:$0xff] 0.0
      %76 = vst [vmem:[#allocation7 + $0x100] sm:$0xff] 0.0
      %77 = vst [vmem:[#allocation7 + $0x108] sm:$0xff] 0.0
      %78 = vst [vmem:[#allocation7 + $0x110] sm:$0xff] 0.0
      %79 = vst [vmem:[#allocation7 + $0x118] sm:$0xff] 0.0
      %80 = vst [vmem:[#allocation7 + $0x120] sm:$0xff] 0.0
      %81 = vst [vmem:[#allocation7 + $0x128] sm:$0xff] 0.0
      %82 = vst [vmem:[#allocation7 + $0x130] sm:$0xff] 0.0
      %83 = vst [vmem:[#allocation7 + $0x138] sm:$0xff] 0.0
      %84 = vst [vmem:[#allocation7 + $0x140] sm:$0xff] 0.0
      %85 = vst [vmem:[#allocation7 + $0x148] sm:$0xff] 0.0
      %86 = vst [vmem:[#allocation7 + $0x150] sm:$0xff] 0.0
      %87 = vst [vmem:[#allocation7 + $0x158] sm:$0xff] 0.0
      %88 = vst [vmem:[#allocation7 + $0x160] sm:$0xff] 0.0
      %89 = vst [vmem:[#allocation7 + $0x168] sm:$0xff] 0.0
      %90 = vst [vmem:[#allocation7 + $0x170] sm:$0xff] 0.0
      %91 = vst [vmem:[#allocation7 + $0x178] sm:$0xff] 0.0
    $region21: #{tpu_custom_call.1} parent=1 // pred_fallthru
      _
    %s92 = smul.u32 0, 128
    %v93 = vld [vmem:[#allocation7] sm:$0xff]
    %v94 = vld [vmem:[#allocation7 + $0x8] sm:$0xff]
    %v95 = vld [vmem:[#allocation7 + $0x10] sm:$0xff]
    %v96 = vld [vmem:[#allocation7 + $0x18] sm:$0xff]
    %v97 = vld [vmem:[#allocation7 + $0x20] sm:$0xff]
    %v98 = vld [vmem:[#allocation7 + $0x28] sm:$0xff]
    %v99 = vld [vmem:[#allocation7 + $0x30] sm:$0xff]
    %v100 = vld [vmem:[#allocation7 + $0x38] sm:$0xff]
    %v101 = vld [vmem:[#allocation7 + $0x40] sm:$0xff]
    %v102 = vld [vmem:[#allocation7 + $0x48] sm:$0xff]
    %v103 = vld [vmem:[#allocation7 + $0x50] sm:$0xff]
    %v104 = vld [vmem:[#allocation7 + $0x58] sm:$0xff]
    %v105 = vld [vmem:[#allocation7 + $0x60] sm:$0xff]
    %v106 = vld [vmem:[#allocation7 + $0x68] sm:$0xff]
    %v107 = vld [vmem:[#allocation7 + $0x70] sm:$0xff]
    %v108 = vld [vmem:[#allocation7 + $0x78] sm:$0xff]
    %v109 = vld [vmem:[#allocation7 + $0x80] sm:$0xff]
    %v110 = vld [vmem:[#allocation7 + $0x88] sm:$0xff]
    %v111 = vld [vmem:[#allocation7 + $0x90] sm:$0xff]
    %v112 = vld [vmem:[#allocation7 + $0x98] sm:$0xff]
    %v113 = vld [vmem:[#allocation7 + $0xa0] sm:$0xff]
    %v114 = vld [vmem:[#allocation7 + $0xa8] sm:$0xff]
    %v115 = vld [vmem:[#allocation7 + $0xb0] sm:$0xff]
    %v116 = vld [vmem:[#allocation7 + $0xb8] sm:$0xff]
    %v117 = vld [vmem:[#allocation7 + $0xc0] sm:$0xff]
    %v118 = vld [vmem:[#allocation7 + $0xc8] sm:$0xff]
    %v119 = vld [vmem:[#allocation7 + $0xd0] sm:$0xff]
    %v120 = vld [vmem:[#allocation7 + $0xd8] sm:$0xff]
    %v121 = vld [vmem:[#allocation7 + $0xe0] sm:$0xff]
    %v122 = vld [vmem:[#allocation7 + $0xe8] sm:$0xff]
    %v123 = vld [vmem:[#allocation7 + $0xf0] sm:$0xff]
    %v124 = vld [vmem:[#allocation7 + $0xf8] sm:$0xff]
    %v125 = vld [vmem:[#allocation7 + $0x100] sm:$0xff]
    %v126 = vld [vmem:[#allocation7 + $0x108] sm:$0xff]
    %v127 = vld [vmem:[#allocation7 + $0x110] sm:$0xff]
    %v128 = vld [vmem:[#allocation7 + $0x118] sm:$0xff]
    %v129 = vld [vmem:[#allocation7 + $0x120] sm:$0xff]
    %v130 = vld [vmem:[#allocation7 + $0x128] sm:$0xff]
    %v131 = vld [vmem:[#allocation7 + $0x130] sm:$0xff]
    %v132 = vld [vmem:[#allocation7 + $0x138] sm:$0xff]
    %v133 = vld [vmem:[#allocation7 + $0x140] sm:$0xff]
    %v134 = vld [vmem:[#allocation7 + $0x148] sm:$0xff]
    %v135 = vld [vmem:[#allocation7 + $0x150] sm:$0xff]
    %v136 = vld [vmem:[#allocation7 + $0x158] sm:$0xff]
    %v137 = vld [vmem:[#allocation7 + $0x160] sm:$0xff]
    %v138 = vld [vmem:[#allocation7 + $0x168] sm:$0xff]
    %v139 = vld [vmem:[#allocation7 + $0x170] sm:$0xff]
    %v140 = vld [vmem:[#allocation7 + $0x178] sm:$0xff]
    %v141 = vld [vmem:[#allocation2] sm:$0xff]
    %v142 = vld [vmem:[#allocation2 + $0x8] sm:$0xff]
    %v143 = vld [vmem:[#allocation2 + $0x10] sm:$0xff]
    %v144 = vld [vmem:[#allocation2 + $0x18] sm:$0xff]
    %v145 = vld [vmem:[#allocation2 + $0x20] sm:$0xff]
    %v146 = vld [vmem:[#allocation2 + $0x28] sm:$0xff]
    %v147 = vld [vmem:[#allocation2 + $0x30] sm:$0xff]
    %v148 = vld [vmem:[#allocation2 + $0x38] sm:$0xff]
    %v149 = vld [vmem:[#allocation2 + $0x40] sm:$0xff]
    %v150 = vld [vmem:[#allocation2 + $0x48] sm:$0xff]
    %v151 = vld [vmem:[#allocation2 + $0x50] sm:$0xff]
    %v152 = vld [vmem:[#allocation2 + $0x58] sm:$0xff]
    %v153 = vld [vmem:[#allocation2 + $0x60] sm:$0xff]
    %v154 = vld [vmem:[#allocation2 + $0x68] sm:$0xff]
    %v155 = vld [vmem:[#allocation2 + $0x70] sm:$0xff]
    %v156 = vld [vmem:[#allocation2 + $0x78] sm:$0xff]
    %v157 = vld [vmem:[#allocation2 + $0x80] sm:$0xff]
    %v158 = vld [vmem:[#allocation2 + $0x88] sm:$0xff]
    %v159 = vld [vmem:[#allocation2 + $0x90] sm:$0xff]
    %v160 = vld [vmem:[#allocation2 + $0x98] sm:$0xff]
    %v161 = vld [vmem:[#allocation2 + $0xa0] sm:$0xff]
    %v162 = vld [vmem:[#allocation2 + $0xa8] sm:$0xff]
    %v163 = vld [vmem:[#allocation2 + $0xb0] sm:$0xff]
    %v164 = vld [vmem:[#allocation2 + $0xb8] sm:$0xff]
    %v165 = vld [vmem:[#allocation2 + $0xc0] sm:$0xff]
    %v166 = vld [vmem:[#allocation2 + $0xc8] sm:$0xff]
    %v167 = vld [vmem:[#allocation2 + $0xd0] sm:$0xff]
    %v168 = vld [vmem:[#allocation2 + $0xd8] sm:$0xff]
    %v169 = vld [vmem:[#allocation2 + $0xe0] sm:$0xff]
    %v170 = vld [vmem:[#allocation2 + $0xe8] sm:$0xff]
    %v171 = vld [vmem:[#allocation2 + $0xf0] sm:$0xff]
    %v172 = vld [vmem:[#allocation2 + $0xf8] sm:$0xff]
    %v173 = vld [vmem:[#allocation2 + $0x100] sm:$0xff]
    %v174 = vld [vmem:[#allocation2 + $0x108] sm:$0xff]
    %v175 = vld [vmem:[#allocation2 + $0x110] sm:$0xff]
    %v176 = vld [vmem:[#allocation2 + $0x118] sm:$0xff]
    %v177 = vld [vmem:[#allocation2 + $0x120] sm:$0xff]
    %v178 = vld [vmem:[#allocation2 + $0x128] sm:$0xff]
    %v179 = vld [vmem:[#allocation2 + $0x130] sm:$0xff]
    %v180 = vld [vmem:[#allocation2 + $0x138] sm:$0xff]
    %v181 = vld [vmem:[#allocation2 + $0x140] sm:$0xff]
    %v182 = vld [vmem:[#allocation2 + $0x148] sm:$0xff]
    %v183 = vld [vmem:[#allocation2 + $0x150] sm:$0xff]
    %v184 = vld [vmem:[#allocation2 + $0x158] sm:$0xff]
    %v185 = vld [vmem:[#allocation2 + $0x160] sm:$0xff]
    %v186 = vld [vmem:[#allocation2 + $0x168] sm:$0xff]
    %v187 = vld [vmem:[#allocation2 + $0x170] sm:$0xff]
    %v188 = vld [vmem:[#allocation2 + $0x178] sm:$0xff]
    %s189 = scalar_lea.vmem [#allocation5], %s92
    %v190 = vld [vmem:[%s189] sm:$0xff]
    %v191 = vld [vmem:[%s189 + $0x8] sm:$0xff]
    %v192 = vld [vmem:[%s189 + $0x10] sm:$0xff]
    %v193 = vld [vmem:[%s189 + $0x18] sm:$0xff]
    %v194 = vld [vmem:[%s189 + $0x20] sm:$0xff]
    %v195 = vld [vmem:[%s189 + $0x28] sm:$0xff]
    %v196 = vld [vmem:[%s189 + $0x30] sm:$0xff]
    %v197 = vld [vmem:[%s189 + $0x38] sm:$0xff]
    %v198 = vld [vmem:[%s189 + $0x40] sm:$0xff]
    %v199 = vld [vmem:[%s189 + $0x48] sm:$0xff]
    %v200 = vld [vmem:[%s189 + $0x50] sm:$0xff]
    %v201 = vld [vmem:[%s189 + $0x58] sm:$0xff]
    %v202 = vld [vmem:[%s189 + $0x60] sm:$0xff]
    %v203 = vld [vmem:[%s189 + $0x68] sm:$0xff]
    %v204 = vld [vmem:[%s189 + $0x70] sm:$0xff]
    %v205 = vld [vmem:[%s189 + $0x78] sm:$0xff]
    %206 = vmatprep.subr.mxu0 0.0
    %207 = vmatpush1.msra.mxu0 %v205
    %208 = vmatprep.subr.mxu0 0.0
    %209 = vmatpush1.msra.mxu0 %v204
    %210 = vmatprep.subr.mxu0 0.0
    %211 = vmatpush1.msra.mxu0 %v203
    %212 = vmatprep.subr.mxu0 0.0
    %213 = vmatpush1.msra.mxu0 %v202
    %214 = vmatprep.subr.mxu0 0.0
    %215 = vmatpush1.msra.mxu0 %v201
    %216 = vmatprep.subr.mxu0 0.0
    %217 = vmatpush1.msra.mxu0 %v200
    %218 = vmatprep.subr.mxu0 0.0
    %219 = vmatpush1.msra.mxu0 %v199
    %220 = vmatprep.subr.mxu0 0.0
    %221 = vmatpush1.msra.mxu0 %v198
    %222 = vmatprep.subr.mxu0 0.0
    %223 = vmatpush1.msra.mxu0 %v197
    %224 = vmatprep.subr.mxu0 0.0
    %225 = vmatpush1.msra.mxu0 %v196
    %226 = vmatprep.subr.mxu0 0.0
    %227 = vmatpush1.msra.mxu0 %v195
    %228 = vmatprep.subr.mxu0 0.0
    %229 = vmatpush1.msra.mxu0 %v194
    %230 = vmatprep.subr.mxu0 0.0
    %231 = vmatpush1.msra.mxu0 %v193
    %232 = vmatprep.subr.mxu0 0.0
    %233 = vmatpush1.msra.mxu0 %v192
    %234 = vmatprep.subr.mxu0 0.0
    %235 = vmatpush1.msra.mxu0 %v191
    %236 = vmatprep.subr.mxu0 0.0
    %237 = vmatpush1.msra.mxu0 %v190
    %238 = vmatprep.subr.mxu0 0.0
    %239 = vmatpush2.msra.mxu0 0.0
    %240 = vmatprep.subr.mxu0 0.0
    %241 = vmatpush2.msra.mxu0 0.0
    %242 = vmatprep.subr.mxu0 0.0
    %243 = vmatpush2.msra.mxu0 0.0
    %244 = vmatprep.subr.mxu0 0.0
    %245 = vmatpush2.msra.mxu0 0.0
    %246 = vmatprep.subr.mxu0 0.0
    %247 = vmatpush2.msra.mxu0 0.0
    %248 = vmatprep.subr.mxu0 0.0
    %249 = vmatpush2.msra.mxu0 0.0
    %250 = vmatprep.subr.mxu0 0.0
    %251 = vmatpush2.msra.mxu0 0.0
    %252 = vmatprep.subr.mxu0 0.0
    %253 = vmatpush2.msra.mxu0 0.0
    %254 = vmatprep.subr.mxu0 0.0
    %255 = vmatpush2.msra.mxu0 0.0
    %256 = vmatprep.subr.mxu0 0.0
    %257 = vmatpush2.msra.mxu0 0.0
    %258 = vmatprep.subr.mxu0 0.0
    %259 = vmatpush2.msra.mxu0 0.0
    %260 = vmatprep.subr.mxu0 0.0
    %261 = vmatpush2.msra.mxu0 0.0
    %262 = vmatprep.subr.mxu0 0.0
    %263 = vmatpush2.msra.mxu0 0.0
    %264 = vmatprep.subr.mxu0 0.0
    %265 = vmatpush2.msra.mxu0 0.0
    %266 = vmatprep.subr.mxu0 0.0
    %267 = vmatpush2.msra.mxu0 0.0
    %268 = vmatprep.subr.mxu0 0.0
    %269 = vmatpush2.msra.mxu0 0.0
    %270 = vmatprep.mubr.f32.mxu0 0.0
    %271 = vmatmul.mubr.f32.gmra.mxu0 %v141
    %v272 = vpop.f32.mrf.mxu0
    %v273 = vadd.f32 0.0, %v272
    %v274 = vpop.f32.mrf.mxu0
    %275 = vmatprep.mubr.f32.mxu0 0.0
    %276 = vmatmul.mubr.f32.gmra.mxu0 %v142
    %v277 = vpop.f32.mrf.mxu0
    %v278 = vadd.f32 0.0, %v277
    %v279 = vpop.f32.mrf.mxu0
    %280 = vmatprep.mubr.f32.mxu0 0.0
    %281 = vmatmul.mubr.f32.gmra.mxu0 %v143
    %v282 = vpop.f32.mrf.mxu0
    %v283 = vadd.f32 0.0, %v282
    %v284 = vpop.f32.mrf.mxu0
    %285 = vmatprep.mubr.f32.mxu0 0.0
    %286 = vmatmul.mubr.f32.gmra.mxu0 %v144
    %v287 = vpop.f32.mrf.mxu0
    %v288 = vadd.f32 0.0, %v287
    %v289 = vpop.f32.mrf.mxu0
    %290 = vmatprep.mubr.f32.mxu0 0.0
    %291 = vmatmul.mubr.f32.gmra.mxu0 %v145
    %v292 = vpop.f32.mrf.mxu0
    %v293 = vadd.f32 0.0, %v292
    %v294 = vpop.f32.mrf.mxu0
    %295 = vmatprep.mubr.f32.mxu0 0.0
    %296 = vmatmul.mubr.f32.gmra.mxu0 %v146
    %v297 = vpop.f32.mrf.mxu0
    %v298 = vadd.f32 0.0, %v297
    %v299 = vpop.f32.mrf.mxu0
    %300 = vmatprep.mubr.f32.mxu0 0.0
    %301 = vmatmul.mubr.f32.gmra.mxu0 %v147
    %v302 = vpop.f32.mrf.mxu0
    %v303 = vadd.f32 0.0, %v302
    %v304 = vpop.f32.mrf.mxu0
    %305 = vmatprep.mubr.f32.mxu0 0.0
    %306 = vmatmul.mubr.f32.gmra.mxu0 %v148
    %v307 = vpop.f32.mrf.mxu0
    %v308 = vadd.f32 0.0, %v307
    %v309 = vpop.f32.mrf.mxu0
    %310 = vmatprep.mubr.f32.mxu0 0.0
    %311 = vmatmul.mubr.f32.gmra.mxu0 %v149
    %v312 = vpop.f32.mrf.mxu0
    %v313 = vadd.f32 0.0, %v312
    %v314 = vpop.f32.mrf.mxu0
    %315 = vmatprep.mubr.f32.mxu0 0.0
    %316 = vmatmul.mubr.f32.gmra.mxu0 %v150
    %v317 = vpop.f32.mrf.mxu0
    %v318 = vadd.f32 0.0, %v317
    %v319 = vpop.f32.mrf.mxu0
    %320 = vmatprep.mubr.f32.mxu0 0.0
    %321 = vmatmul.mubr.f32.gmra.mxu0 %v151
    %v322 = vpop.f32.mrf.mxu0
    %v323 = vadd.f32 0.0, %v322
    %v324 = vpop.f32.mrf.mxu0
    %325 = vmatprep.mubr.f32.mxu0 0.0
    %326 = vmatmul.mubr.f32.gmra.mxu0 %v152
    %v327 = vpop.f32.mrf.mxu0
    %v328 = vadd.f32 0.0, %v327
    %v329 = vpop.f32.mrf.mxu0
    %330 = vmatprep.mubr.f32.mxu0 0.0
    %331 = vmatmul.mubr.f32.gmra.mxu0 %v153
    %v332 = vpop.f32.mrf.mxu0
    %v333 = vadd.f32 0.0, %v332
    %v334 = vpop.f32.mrf.mxu0
    %335 = vmatprep.mubr.f32.mxu0 0.0
    %336 = vmatmul.mubr.f32.gmra.mxu0 %v154
    %v337 = vpop.f32.mrf.mxu0
    %v338 = vadd.f32 0.0, %v337
    %v339 = vpop.f32.mrf.mxu0
    %340 = vmatprep.mubr.f32.mxu0 0.0
    %341 = vmatmul.mubr.f32.gmra.mxu0 %v155
    %v342 = vpop.f32.mrf.mxu0
    %v343 = vadd.f32 0.0, %v342
    %v344 = vpop.f32.mrf.mxu0
    %345 = vmatprep.mubr.f32.mxu0 0.0
    %346 = vmatmul.mubr.f32.gmra.mxu0 %v156
    %v347 = vpop.f32.mrf.mxu0
    %v348 = vadd.f32 0.0, %v347
    %v349 = vpop.f32.mrf.mxu0
    %350 = vmatprep.mubr.f32.mxu0 0.0
    %351 = vmatmul.mubr.f32.gmra.mxu0 %v157
    %v352 = vpop.f32.mrf.mxu0
    %v353 = vadd.f32 0.0, %v352
    %v354 = vpop.f32.mrf.mxu0
    %355 = vmatprep.mubr.f32.mxu0 0.0
    %356 = vmatmul.mubr.f32.gmra.mxu0 %v158
    %v357 = vpop.f32.mrf.mxu0
    %v358 = vadd.f32 0.0, %v357
    %v359 = vpop.f32.mrf.mxu0
    %360 = vmatprep.mubr.f32.mxu0 0.0
    %361 = vmatmul.mubr.f32.gmra.mxu0 %v159
    %v362 = vpop.f32.mrf.mxu0
    %v363 = vadd.f32 0.0, %v362
    %v364 = vpop.f32.mrf.mxu0
    %365 = vmatprep.mubr.f32.mxu0 0.0
    %366 = vmatmul.mubr.f32.gmra.mxu0 %v160
    %v367 = vpop.f32.mrf.mxu0
    %v368 = vadd.f32 0.0, %v367
    %v369 = vpop.f32.mrf.mxu0
    %370 = vmatprep.mubr.f32.mxu0 0.0
    %371 = vmatmul.mubr.f32.gmra.mxu0 %v161
    %v372 = vpop.f32.mrf.mxu0
    %v373 = vadd.f32 0.0, %v372
    %v374 = vpop.f32.mrf.mxu0
    %375 = vmatprep.mubr.f32.mxu0 0.0
    %376 = vmatmul.mubr.f32.gmra.mxu0 %v162
    %v377 = vpop.f32.mrf.mxu0
    %v378 = vadd.f32 0.0, %v377
    %v379 = vpop.f32.mrf.mxu0
    %380 = vmatprep.mubr.f32.mxu0 0.0
    %381 = vmatmul.mubr.f32.gmra.mxu0 %v163
    %v382 = vpop.f32.mrf.mxu0
    %v383 = vadd.f32 0.0, %v382
    %v384 = vpop.f32.mrf.mxu0
    %385 = vmatprep.mubr.f32.mxu0 0.0
    %386 = vmatmul.mubr.f32.gmra.mxu0 %v164
    %v387 = vpop.f32.mrf.mxu0
    %v388 = vadd.f32 0.0, %v387
    %v389 = vpop.f32.mrf.mxu0
    %390 = vmatprep.mubr.f32.mxu0 0.0
    %391 = vmatmul.mubr.f32.gmra.mxu0 %v165
    %v392 = vpop.f32.mrf.mxu0
    %v393 = vadd.f32 0.0, %v392
    %v394 = vpop.f32.mrf.mxu0
    %395 = vmatprep.mubr.f32.mxu0 0.0
    %396 = vmatmul.mubr.f32.gmra.mxu0 %v166
    %v397 = vpop.f32.mrf.mxu0
    %v398 = vadd.f32 0.0, %v397
    %v399 = vpop.f32.mrf.mxu0
    %400 = vmatprep.mubr.f32.mxu0 0.0
    %401 = vmatmul.mubr.f32.gmra.mxu0 %v167
    %v402 = vpop.f32.mrf.mxu0
    %v403 = vadd.f32 0.0, %v402
    %v404 = vpop.f32.mrf.mxu0
    %405 = vmatprep.mubr.f32.mxu0 0.0
    %406 = vmatmul.mubr.f32.gmra.mxu0 %v168
    %v407 = vpop.f32.mrf.mxu0
    %v408 = vadd.f32 0.0, %v407
    %v409 = vpop.f32.mrf.mxu0
    %410 = vmatprep.mubr.f32.mxu0 0.0
    %411 = vmatmul.mubr.f32.gmra.mxu0 %v169
    %v412 = vpop.f32.mrf.mxu0
    %v413 = vadd.f32 0.0, %v412
    %v414 = vpop.f32.mrf.mxu0
    %415 = vmatprep.mubr.f32.mxu0 0.0
    %416 = vmatmul.mubr.f32.gmra.mxu0 %v170
    %v417 = vpop.f32.mrf.mxu0
    %v418 = vadd.f32 0.0, %v417
    %v419 = vpop.f32.mrf.mxu0
    %420 = vmatprep.mubr.f32.mxu0 0.0
    %421 = vmatmul.mubr.f32.gmra.mxu0 %v171
    %v422 = vpop.f32.mrf.mxu0
    %v423 = vadd.f32 0.0, %v422
    %v424 = vpop.f32.mrf.mxu0
    %425 = vmatprep.mubr.f32.mxu0 0.0
    %426 = vmatmul.mubr.f32.gmra.mxu0 %v172
    %v427 = vpop.f32.mrf.mxu0
    %v428 = vadd.f32 0.0, %v427
    %v429 = vpop.f32.mrf.mxu0
    %430 = vmatprep.mubr.f32.mxu0 0.0
    %431 = vmatmul.mubr.f32.gmra.mxu0 %v173
    %v432 = vpop.f32.mrf.mxu0
    %v433 = vadd.f32 0.0, %v432
    %v434 = vpop.f32.mrf.mxu0
    %435 = vmatprep.mubr.f32.mxu0 0.0
    %436 = vmatmul.mubr.f32.gmra.mxu0 %v174
    %v437 = vpop.f32.mrf.mxu0
    %v438 = vadd.f32 0.0, %v437
    %v439 = vpop.f32.mrf.mxu0
    %440 = vmatprep.mubr.f32.mxu0 0.0
    %441 = vmatmul.mubr.f32.gmra.mxu0 %v175
    %v442 = vpop.f32.mrf.mxu0
    %v443 = vadd.f32 0.0, %v442
    %v444 = vpop.f32.mrf.mxu0
    %445 = vmatprep.mubr.f32.mxu0 0.0
    %446 = vmatmul.mubr.f32.gmra.mxu0 %v176
    %v447 = vpop.f32.mrf.mxu0
    %v448 = vadd.f32 0.0, %v447
    %v449 = vpop.f32.mrf.mxu0
    %450 = vmatprep.mubr.f32.mxu0 0.0
    %451 = vmatmul.mubr.f32.gmra.mxu0 %v177
    %v452 = vpop.f32.mrf.mxu0
    %v453 = vadd.f32 0.0, %v452
    %v454 = vpop.f32.mrf.mxu0
    %455 = vmatprep.mubr.f32.mxu0 0.0
    %456 = vmatmul.mubr.f32.gmra.mxu0 %v178
    %v457 = vpop.f32.mrf.mxu0
    %v458 = vadd.f32 0.0, %v457
    %v459 = vpop.f32.mrf.mxu0
    %460 = vmatprep.mubr.f32.mxu0 0.0
    %461 = vmatmul.mubr.f32.gmra.mxu0 %v179
    %v462 = vpop.f32.mrf.mxu0
    %v463 = vadd.f32 0.0, %v462
    %v464 = vpop.f32.mrf.mxu0
    %465 = vmatprep.mubr.f32.mxu0 0.0
    %466 = vmatmul.mubr.f32.gmra.mxu0 %v180
    %v467 = vpop.f32.mrf.mxu0
    %v468 = vadd.f32 0.0, %v467
    %v469 = vpop.f32.mrf.mxu0
    %470 = vmatprep.mubr.f32.mxu0 0.0
    %471 = vmatmul.mubr.f32.gmra.mxu0 %v181
    %v472 = vpop.f32.mrf.mxu0
    %v473 = vadd.f32 0.0, %v472
    %v474 = vpop.f32.mrf.mxu0
    %475 = vmatprep.mubr.f32.mxu0 0.0
    %476 = vmatmul.mubr.f32.gmra.mxu0 %v182
    %v477 = vpop.f32.mrf.mxu0
    %v478 = vadd.f32 0.0, %v477
    %v479 = vpop.f32.mrf.mxu0
    %480 = vmatprep.mubr.f32.mxu0 0.0
    %481 = vmatmul.mubr.f32.gmra.mxu0 %v183
    %v482 = vpop.f32.mrf.mxu0
    %v483 = vadd.f32 0.0, %v482
    %v484 = vpop.f32.mrf.mxu0
    %485 = vmatprep.mubr.f32.mxu0 0.0
    %486 = vmatmul.mubr.f32.gmra.mxu0 %v184
    %v487 = vpop.f32.mrf.mxu0
    %v488 = vadd.f32 0.0, %v487
    %v489 = vpop.f32.mrf.mxu0
    %490 = vmatprep.mubr.f32.mxu0 0.0
    %491 = vmatmul.mubr.f32.gmra.mxu0 %v185
    %v492 = vpop.f32.mrf.mxu0
    %v493 = vadd.f32 0.0, %v492
    %v494 = vpop.f32.mrf.mxu0
    %495 = vmatprep.mubr.f32.mxu0 0.0
    %496 = vmatmul.mubr.f32.gmra.mxu0 %v186
    %v497 = vpop.f32.mrf.mxu0
    %v498 = vadd.f32 0.0, %v497
    %v499 = vpop.f32.mrf.mxu0
    %500 = vmatprep.mubr.f32.mxu0 0.0
    %501 = vmatmul.mubr.f32.gmra.mxu0 %v187
    %v502 = vpop.f32.mrf.mxu0
    %v503 = vadd.f32 0.0, %v502
    %v504 = vpop.f32.mrf.mxu0
    %505 = vmatprep.mubr.f32.mxu0 0.0
    %506 = vmatmul.mubr.f32.gmra.mxu0 %v188
    %v507 = vpop.f32.mrf.mxu0
    %v508 = vadd.f32 0.0, %v507
    %v509 = vpop.f32.mrf.mxu0
    %510 = vdwg.mxu0
    %v511 = vadd.f32 %v93, %v273
    %v512 = vadd.f32 %v94, %v278
    %v513 = vadd.f32 %v95, %v283
    %v514 = vadd.f32 %v96, %v288
    %v515 = vadd.f32 %v97, %v293
    %v516 = vadd.f32 %v98, %v298
    %v517 = vadd.f32 %v99, %v303
    %v518 = vadd.f32 %v100, %v308
    %v519 = vadd.f32 %v101, %v313
    %v520 = vadd.f32 %v102, %v318
    %v521 = vadd.f32 %v103, %v323
    %v522 = vadd.f32 %v104, %v328
    %v523 = vadd.f32 %v105, %v333
    %v524 = vadd.f32 %v106, %v338
    %v525 = vadd.f32 %v107, %v343
    %v526 = vadd.f32 %v108, %v348
    %v527 = vadd.f32 %v109, %v353
    %v528 = vadd.f32 %v110, %v358
    %v529 = vadd.f32 %v111, %v363
    %v530 = vadd.f32 %v112, %v368
    %v531 = vadd.f32 %v113, %v373
    %v532 = vadd.f32 %v114, %v378
    %v533 = vadd.f32 %v115, %v383
    %v534 = vadd.f32 %v116, %v388
    %v535 = vadd.f32 %v117, %v393
    %v536 = vadd.f32 %v118, %v398
    %v537 = vadd.f32 %v119, %v403
    %v538 = vadd.f32 %v120, %v408
    %v539 = vadd.f32 %v121, %v413
    %v540 = vadd.f32 %v122, %v418
    %v541 = vadd.f32 %v123, %v423
    %v542 = vadd.f32 %v124, %v428
    %v543 = vadd.f32 %v125, %v433
    %v544 = vadd.f32 %v126, %v438
    %v545 = vadd.f32 %v127, %v443
    %v546 = vadd.f32 %v128, %v448
    %v547 = vadd.f32 %v129, %v453
    %v548 = vadd.f32 %v130, %v458
    %v549 = vadd.f32 %v131, %v463
    %v550 = vadd.f32 %v132, %v468
    %v551 = vadd.f32 %v133, %v473
    %v552 = vadd.f32 %v134, %v478
    %v553 = vadd.f32 %v135, %v483
    %v554 = vadd.f32 %v136, %v488
    %v555 = vadd.f32 %v137, %v493
    %v556 = vadd.f32 %v138, %v498
    %v557 = vadd.f32 %v139, %v503
    %v558 = vadd.f32 %v140, %v508
    %559 = vst [vmem:[#allocation7] sm:$0xff] %v511
    %560 = vst [vmem:[#allocation7 + $0x8] sm:$0xff] %v512
    %561 = vst [vmem:[#allocation7 + $0x10] sm:$0xff] %v513
    %562 = vst [vmem:[#allocation7 + $0x18] sm:$0xff] %v514
    %563 = vst [vmem:[#allocation7 + $0x20] sm:$0xff] %v515
    %564 = vst [vmem:[#allocation7 + $0x28] sm:$0xff] %v516
    %565 = vst [vmem:[#allocation7 + $0x30] sm:$0xff] %v517
    %566 = vst [vmem:[#allocation7 + $0x38] sm:$0xff] %v518
    %567 = vst [vmem:[#allocation7 + $0x40] sm:$0xff] %v519
    %568 = vst [vmem:[#allocation7 + $0x48] sm:$0xff] %v520
    %569 = vst [vmem:[#allocation7 + $0x50] sm:$0xff] %v521
    %570 = vst [vmem:[#allocation7 + $0x58] sm:$0xff] %v522
    %571 = vst [vmem:[#allocation7 + $0x60] sm:$0xff] %v523
    %572 = vst [vmem:[#allocation7 + $0x68] sm:$0xff] %v524
    %573 = vst [vmem:[#allocation7 + $0x70] sm:$0xff] %v525
    %574 = vst [vmem:[#allocation7 + $0x78] sm:$0xff] %v526
    %575 = vst [vmem:[#allocation7 + $0x80] sm:$0xff] %v527
    %576 = vst [vmem:[#allocation7 + $0x88] sm:$0xff] %v528
    %577 = vst [vmem:[#allocation7 + $0x90] sm:$0xff] %v529
    %578 = vst [vmem:[#allocation7 + $0x98] sm:$0xff] %v530
    %579 = vst [vmem:[#allocation7 + $0xa0] sm:$0xff] %v531
    %580 = vst [vmem:[#allocation7 + $0xa8] sm:$0xff] %v532
    %581 = vst [vmem:[#allocation7 + $0xb0] sm:$0xff] %v533
    %582 = vst [vmem:[#allocation7 + $0xb8] sm:$0xff] %v534
    %583 = vst [vmem:[#allocation7 + $0xc0] sm:$0xff] %v535
    %584 = vst [vmem:[#allocation7 + $0xc8] sm:$0xff] %v536
    %585 = vst [vmem:[#allocation7 + $0xd0] sm:$0xff] %v537
    %586 = vst [vmem:[#allocation7 + $0xd8] sm:$0xff] %v538
    %587 = vst [vmem:[#allocation7 + $0xe0] sm:$0xff] %v539
    %588 = vst [vmem:[#allocation7 + $0xe8] sm:$0xff] %v540
    %589 = vst [vmem:[#allocation7 + $0xf0] sm:$0xff] %v541
    %590 = vst [vmem:[#allocation7 + $0xf8] sm:$0xff] %v542
    %591 = vst [vmem:[#allocation7 + $0x100] sm:$0xff] %v543
    %592 = vst [vmem:[#allocation7 + $0x108] sm:$0xff] %v544
    %593 = vst [vmem:[#allocation7 + $0x110] sm:$0xff] %v545
    %594 = vst [vmem:[#allocation7 + $0x118] sm:$0xff] %v546
    %595 = vst [vmem:[#allocation7 + $0x120] sm:$0xff] %v547
    %596 = vst [vmem:[#allocation7 + $0x128] sm:$0xff] %v548
    %597 = vst [vmem:[#allocation7 + $0x130] sm:$0xff] %v549
    %598 = vst [vmem:[#allocation7 + $0x138] sm:$0xff] %v550
    %599 = vst [vmem:[#allocation7 + $0x140] sm:$0xff] %v551
    %600 = vst [vmem:[#allocation7 + $0x148] sm:$0xff] %v552
    %601 = vst [vmem:[#allocation7 + $0x150] sm:$0xff] %v553
    %602 = vst [vmem:[#allocation7 + $0x158] sm:$0xff] %v554
    %603 = vst [vmem:[#allocation7 + $0x160] sm:$0xff] %v555
    %604 = vst [vmem:[#allocation7 + $0x168] sm:$0xff] %v556
    %605 = vst [vmem:[#allocation7 + $0x170] sm:$0xff] %v557
    %606 = vst [vmem:[#allocation7 + $0x178] sm:$0xff] %v558
    // Predicated region
    $region22: #{tpu_custom_call.1} parent=1 // pred_check
      _
    $region23: #{tpu_custom_call.1} parent=1 // pred_check_branch
      %608 = sbr.rel (0) target = $region25
    $region24: #{tpu_custom_call.1} parent=1 // pred_region
      %s610 = ssub.s32 6144, 6144
      %611 = vsyncadd [#allocation4], %s610
      %s612 = sshll.u32 [#allocation7], 4
      %s613 = int_to_ptr.vmem [resolvable:$true] %s612
      %618 = dma.vmem_to_hbm [thread:$0]  %s613, 6144, %s2, [#allocation4], 128, 128, 8
    $region25: #{tpu_custom_call.1} parent=1 // pred_fallthru
      _
    // Predicated region
    $region26: #{tpu_custom_call.1} parent=1 // pred_check
      _
    $region27: #{tpu_custom_call.1} parent=1 // pred_check_branch
      %620 = sbr.rel (0) target = $region29
    $region28: #{tpu_custom_call.1} parent=1 // pred_region
      %621 = dma.done [#allocation4], 6144
    $region29: #{tpu_custom_call.1} parent=1 // pred_fallthru
      _
    %622 = vsyncpa [#allocation3], 1
    %623 = vsyncpa [#allocation6], 1
    %624 = vsyncpa [#allocation4], 1

</llo_original>
